<compile_context>
chip_gen: v5e
topology: v5e:2x2
jax: 0.10.0
libtpu: 0.0.40
codegen_flags: <defaults>
</compile_context>

<pallas_src>
import jax
import jax.numpy as jnp
from jax.experimental import pallas as pl
from jax.experimental.pallas import tpu as pltpu

# Module hyper-parameters (consistent with the PyTorch __init__ defaults).
STATE_DIM = 4
ACTION_DIM = 4
DIM = STATE_DIM + ACTION_DIM        # input feature dim = state_dim + action_dim
HIDDEN = 128                        # hidden_dim
DEPTH = 4                           # number of hidden layers (>= 1)
SIGMA = 0.1                         # unused in forward(); kept for fidelity

assert DEPTH >= 2, "stacked hidden-weight layout below assumes depth >= 2"

# TODO(synk): deen_loss() (autograd grad of E w.r.t. inputs) and log_energy()
# are training/inference wrappers around forward(); only forward() is kernelized.


def deen_mlp_kernel(x_ref, w0_ref, b0_ref, wh_ref, bh_ref, wo_ref, bo_ref, o_ref):
    """Forward of the DEEN energy MLP on one batch tile.

    x_ref : (TB, DIM)                f32
    w0_ref: (DIM, HIDDEN)            matmul dtype (bf16 perf path / f32 check path)
    b0_ref: (1, HIDDEN)              elementwise dtype
    wh_ref: (DEPTH-1, HIDDEN, HIDDEN) matmul dtype
    bh_ref: (DEPTH-1, 1, HIDDEN)      elementwise dtype
    wo_ref: (HIDDEN, 1)              matmul dtype (original column shape -> no transpose)
    bo_ref: (1, 1)                   f32
    o_ref : (TB, 1)                  f32 energies
    """
    cdt = w0_ref.dtype  # MXU operand dtype
    edt = b0_ref.dtype  # bias-add / ReLU dtype

    # First Linear + ReLU (MXU matmul, f32 accumulation; bias/ReLU on VPU).
    h = jnp.dot(x_ref[...].astype(cdt), w0_ref[...],
                preferred_element_type=jnp.float32)
    h = jnp.maximum(h.astype(edt) + b0_ref[...], 0.0)

    # (depth - 1) hidden Linear + ReLU layers (static unroll, K = N = 128).
    for i in range(DEPTH - 1):
        h = jnp.dot(h.astype(cdt), wh_ref[i],
                    preferred_element_type=jnp.float32)
        h = jnp.maximum(h.astype(edt) + bh_ref[i], 0.0)

    # Output head: (TB, H) @ (H, 1) -> (TB, 1).  Both operands already in the
    # MXU's natural (M,K)x(K,N) orientation, so no activation transpose.
    e = jnp.dot(h.astype(cdt), wo_ref[...], preferred_element_type=jnp.float32)
    o_ref[...] = (e + bo_ref[...].astype(jnp.float32)).astype(o_ref.dtype)


def _round_up(n, m):
    return ((n + m - 1) // m) * m


def _choose_tile_b(B, cap=4096, min_split=2048):
    """Batch tile: 1 grid step for small/medium B, an even number of <=cap-row
    tiles for large B (keeps both v7x TensorCores equally busy)."""
    B8 = max(8, _round_up(B, 8))
    if B8 < min_split:
        return B8                                # single tile
    nt = max(2, pl.cdiv(B8, cap))
    if nt % 2:
        nt += 1                                  # even tile count for megacore
    return _round_up(pl.cdiv(B8, nt), 8)


def deen_forward(x, params, *, tile_b=None,
                 matmul_dtype=jnp.bfloat16, elementwise_dtype=jnp.float32):
    """Pallas implementation of DEENDensity.forward: returns E(x) of shape (B,).

    matmul_dtype:      MXU operand dtype (bf16 for perf, f32 for exact checking).
    elementwise_dtype: bias-add/ReLU dtype; keep f32 on v5e (no bf16 VPU),
                       bfloat16 is fine on v6e/v7x.
    """
    w0, b0, wh, bh, wo, bo = params
    B, D = x.shape
    assert D == DIM

    if tile_b is None:
        tile_b = _choose_tile_b(B)
    tile_b = max(8, _round_up(tile_b, 8))        # sublane-rule guard
    num_tiles = pl.cdiv(B, tile_b)               # last block may overhang; Pallas pads

    # Cast operands once at the boundary (halves weight DMA / VMEM footprint).
    w0c = w0.astype(matmul_dtype)
    whc = wh.astype(matmul_dtype)
    woc = wo.astype(matmul_dtype)                # keep (HIDDEN, 1) column shape
    b0c = b0.astype(elementwise_dtype)
    bhc = bh.astype(elementwise_dtype)

    out = pl.pallas_call(
        deen_mlp_kernel,
        out_shape=jax.ShapeDtypeStruct((B, 1), jnp.float32),
        grid=(num_tiles,),
        in_specs=[
            pl.BlockSpec((tile_b, DIM), lambda i: (i, 0)),                  # x tile
            pl.BlockSpec((DIM, HIDDEN), lambda i: (0, 0)),                  # W0
            pl.BlockSpec((1, HIDDEN), lambda i: (0, 0)),                    # b0
            pl.BlockSpec((DEPTH - 1, HIDDEN, HIDDEN), lambda i: (0, 0, 0)), # hidden Ws
            pl.BlockSpec((DEPTH - 1, 1, HIDDEN), lambda i: (0, 0, 0)),      # hidden bs
            pl.BlockSpec((HIDDEN, 1), lambda i: (0, 0)),                    # W_out col
            pl.BlockSpec((1, 1), lambda i: (0, 0)),                         # b_out
        ],
        out_specs=pl.BlockSpec((tile_b, 1), lambda i: (i, 0)),
        compiler_params=pltpu.CompilerParams(dimension_semantics=("parallel",)),
    )(x, w0c, b0c, whc, bhc, woc, bo)

    # Matches torch's `self.net(x).squeeze(-1)`.
    return out[:, 0]


def init_params(key):
    """Deterministic synthetic parameters (weights stored as (in, out))."""
    k0, k1, k2, k3, k4, k5 = jax.random.split(key, 6)
    scale = 0.1
    w0 = scale * jax.random.normal(k0, (DIM, HIDDEN), jnp.float32)
    b0 = scale * jax.random.normal(k1, (1, HIDDEN), jnp.float32)
    wh = scale * jax.random.normal(k2, (DEPTH - 1, HIDDEN, HIDDEN), jnp.float32)
    bh = scale * jax.random.normal(k3, (DEPTH - 1, 1, HIDDEN), jnp.float32)
    wo = scale * jax.random.normal(k4, (HIDDEN, 1), jnp.float32)
    bo = scale * jax.random.normal(k5, (1, 1), jnp.float32)
    return w0, b0, wh, bh, wo, bo


def deen_forward_ref(x, params):
    """Pure-JAX f32 reference for correctness checking."""
    w0, b0, wh, bh, wo, bo = params
    h = jnp.maximum(x @ w0 + b0, 0.0)
    for i in range(DEPTH - 1):
        h = jnp.maximum(h @ wh[i] + bh[i], 0.0)
    return (h @ wo + bo)[:, 0]


if __name__ == "__main__":
    key = jax.random.PRNGKey(0)
    kx, kp = jax.random.split(key)
    params = init_params(kp)

    # --- small primary check, exact f32 matmul path -------------------------
    B = 8
    x = jax.random.normal(kx, (B, DIM), jnp.float32)
    y_ref = deen_forward_ref(x, params)

    y_f32 = jax.block_until_ready(deen_forward(x, params, matmul_dtype=jnp.float32))
    assert y_f32.shape == (B,)
    assert jnp.allclose(y_f32, y_ref, atol=1e-4, rtol=1e-4), (y_f32, y_ref)

    # --- same inputs, default bf16-matmul / f32-accumulate path -------------
    y_bf16 = jax.block_until_ready(deen_forward(x, params))
    assert y_bf16.shape == (B,)
    assert jnp.allclose(y_bf16, y_ref, atol=5e-2, rtol=5e-2), (y_bf16, y_ref)

    # --- ragged batch: single overhanging block (no wrapper pad) ------------
    B2 = 50
    x2 = jax.random.normal(jax.random.fold_in(kx, 1), (B2, DIM), jnp.float32)
    y2 = jax.block_until_ready(deen_forward(x2, params))
    y2_ref = deen_forward_ref(x2, params)
    assert y2.shape == (B2,)
    assert jnp.allclose(y2, y2_ref, atol=5e-2, rtol=5e-2), (y2, y2_ref)

    # --- larger batch: exercises the even-multi-tile path --------------------
    B3 = 3000
    x3 = jax.random.normal(jax.random.fold_in(kx, 2), (B3, DIM), jnp.float32)
    y3 = jax.block_until_ready(deen_forward(x3, params))
    y3_ref = deen_forward_ref(x3, params)
    assert y3.shape == (B3,)
    assert jnp.allclose(y3, y3_ref, atol=5e-2, rtol=5e-2)

    print("KERNEL_OK")
</pallas_src>

<mosaic_0001>
module attributes {stable_mosaic.version = 11 : i64} {
  func.func @deen_mlp_kernel(%arg0: i32, %arg1: memref<8x8xf32, #tpu.memory_space<vmem>>, %arg2: memref<8x128xf32, #tpu.memory_space<vmem>>, %arg3: memref<1x128xf32, #tpu.memory_space<vmem>>, %arg4: memref<3x128x128xf32, #tpu.memory_space<vmem>>, %arg5: memref<3x1x128xf32, #tpu.memory_space<vmem>>, %arg6: memref<128x1xf32, #tpu.memory_space<vmem>>, %arg7: memref<1x1xf32, #tpu.memory_space<vmem>>, %arg8: memref<8x1xf32, #tpu.memory_space<vmem>>) attributes {dimension_semantics = [#tpu.dimension_semantics<parallel>], iteration_bounds = array<i64: 1>, scalar_prefetch = 0 : i64, scratch_operands = 0 : i64, tpu.core_type = #tpu.core_type<tc>, window_params = [{transform_indices = @transform_0, window_bounds = array<i64: 8, 8>}, {pipeline_mode = #tpu.pipeline_mode<synchronous>, transform_indices = @transform_1, window_bounds = array<i64: 8, 128>}, {pipeline_mode = #tpu.pipeline_mode<synchronous>, transform_indices = @transform_2, window_bounds = array<i64: 1, 128>}, {pipeline_mode = #tpu.pipeline_mode<synchronous>, transform_indices = @transform_3, window_bounds = array<i64: 3, 128, 128>}, {pipeline_mode = #tpu.pipeline_mode<synchronous>, transform_indices = @transform_4, window_bounds = array<i64: 3, 1, 128>}, {pipeline_mode = #tpu.pipeline_mode<synchronous>, transform_indices = @transform_5, window_bounds = array<i64: 128, 1>}, {pipeline_mode = #tpu.pipeline_mode<synchronous>, transform_indices = @transform_6, window_bounds = array<i64: 1, 1>}, {transform_indices = @transform_7, window_bounds = array<i64: 8, 1>}]} {
    %c0 = arith.constant 0 : index
    %c0_0 = arith.constant 0 : index
    %0 = vector.load %arg1[%c0, %c0_0] : memref<8x8xf32, #tpu.memory_space<vmem>>, vector<8x8xf32>
    %c0_1 = arith.constant 0 : index
    %c0_2 = arith.constant 0 : index
    %1 = vector.load %arg2[%c0_1, %c0_2] : memref<8x128xf32, #tpu.memory_space<vmem>>, vector<8x128xf32>
    %cst = arith.constant dense<0.000000e+00> : vector<8x128xf32>
    %2 = tpu.matmul %0, %1, %cst {dimension_numbers = #tpu.dot_dimension_numbers<[1], [0], [0], [1], [0, 0, 1, 1], [], []>} : vector<8x8xf32>, vector<8x128xf32>, vector<8x128xf32> -> vector<8x128xf32>
    %c0_3 = arith.constant 0 : index
    %c0_4 = arith.constant 0 : index
    %3 = vector.load %arg3[%c0_3, %c0_4] : memref<1x128xf32, #tpu.memory_space<vmem>>, vector<1x128xf32>
    %4 = vector.broadcast %3 : vector<1x128xf32> to vector<8x128xf32>
    %5 = arith.addf %2, %4 : vector<8x128xf32>
    %cst_5 = arith.constant 0.000000e+00 : f32
    %6 = vector.broadcast %cst_5 : f32 to vector<8x128xf32>
    %7 = arith.maximumf %5, %6 : vector<8x128xf32>
    %c0_6 = arith.constant 0 : index
    %c0_7 = arith.constant 0 : index
    %c0_8 = arith.constant 0 : index
    %8 = vector.load %arg4[%c0_6, %c0_7, %c0_8] : memref<3x128x128xf32, #tpu.memory_space<vmem>>, vector<1x128x128xf32>
    %9 = vector.shape_cast %8 : vector<1x128x128xf32> to vector<128x128xf32>
    %cst_9 = arith.constant dense<0.000000e+00> : vector<8x128xf32>
    %10 = tpu.matmul %7, %9, %cst_9 {dimension_numbers = #tpu.dot_dimension_numbers<[1], [0], [0], [1], [0, 0, 1, 1], [], []>} : vector<8x128xf32>, vector<128x128xf32>, vector<8x128xf32> -> vector<8x128xf32>
    %c0_10 = arith.constant 0 : index
    %c0_11 = arith.constant 0 : index
    %c0_12 = arith.constant 0 : index
    %11 = vector.load %arg5[%c0_10, %c0_11, %c0_12] : memref<3x1x128xf32, #tpu.memory_space<vmem>>, vector<1x1x128xf32>
    %12 = vector.shape_cast %11 : vector<1x1x128xf32> to vector<1x128xf32>
    %13 = vector.broadcast %12 : vector<1x128xf32> to vector<8x128xf32>
    %14 = arith.addf %10, %13 : vector<8x128xf32>
    %cst_13 = arith.constant 0.000000e+00 : f32
    %15 = vector.broadcast %cst_13 : f32 to vector<8x128xf32>
    %16 = arith.maximumf %14, %15 : vector<8x128xf32>
    %c1 = arith.constant 1 : index
    %c0_14 = arith.constant 0 : index
    %c0_15 = arith.constant 0 : index
    %17 = vector.load %arg4[%c1, %c0_14, %c0_15] : memref<3x128x128xf32, #tpu.memory_space<vmem>>, vector<1x128x128xf32>
    %18 = vector.shape_cast %17 : vector<1x128x128xf32> to vector<128x128xf32>
    %cst_16 = arith.constant dense<0.000000e+00> : vector<8x128xf32>
    %19 = tpu.matmul %16, %18, %cst_16 {dimension_numbers = #tpu.dot_dimension_numbers<[1], [0], [0], [1], [0, 0, 1, 1], [], []>} : vector<8x128xf32>, vector<128x128xf32>, vector<8x128xf32> -> vector<8x128xf32>
    %c1_17 = arith.constant 1 : index
    %c0_18 = arith.constant 0 : index
    %c0_19 = arith.constant 0 : index
    %20 = vector.load %arg5[%c1_17, %c0_18, %c0_19] : memref<3x1x128xf32, #tpu.memory_space<vmem>>, vector<1x1x128xf32>
    %21 = vector.shape_cast %20 : vector<1x1x128xf32> to vector<1x128xf32>
    %22 = vector.broadcast %21 : vector<1x128xf32> to vector<8x128xf32>
    %23 = arith.addf %19, %22 : vector<8x128xf32>
    %cst_20 = arith.constant 0.000000e+00 : f32
    %24 = vector.broadcast %cst_20 : f32 to vector<8x128xf32>
    %25 = arith.maximumf %23, %24 : vector<8x128xf32>
    %c2 = arith.constant 2 : index
    %c0_21 = arith.constant 0 : index
    %c0_22 = arith.constant 0 : index
    %26 = vector.load %arg4[%c2, %c0_21, %c0_22] : memref<3x128x128xf32, #tpu.memory_space<vmem>>, vector<1x128x128xf32>
    %27 = vector.shape_cast %26 : vector<1x128x128xf32> to vector<128x128xf32>
    %cst_23 = arith.constant dense<0.000000e+00> : vector<8x128xf32>
    %28 = tpu.matmul %25, %27, %cst_23 {dimension_numbers = #tpu.dot_dimension_numbers<[1], [0], [0], [1], [0, 0, 1, 1], [], []>} : vector<8x128xf32>, vector<128x128xf32>, vector<8x128xf32> -> vector<8x128xf32>
    %c2_24 = arith.constant 2 : index
    %c0_25 = arith.constant 0 : index
    %c0_26 = arith.constant 0 : index
    %29 = vector.load %arg5[%c2_24, %c0_25, %c0_26] : memref<3x1x128xf32, #tpu.memory_space<vmem>>, vector<1x1x128xf32>
    %30 = vector.shape_cast %29 : vector<1x1x128xf32> to vector<1x128xf32>
    %31 = vector.broadcast %30 : vector<1x128xf32> to vector<8x128xf32>
    %32 = arith.addf %28, %31 : vector<8x128xf32>
    %cst_27 = arith.constant 0.000000e+00 : f32
    %33 = vector.broadcast %cst_27 : f32 to vector<8x128xf32>
    %34 = arith.maximumf %32, %33 : vector<8x128xf32>
    %c0_28 = arith.constant 0 : index
    %c0_29 = arith.constant 0 : index
    %35 = vector.load %arg6[%c0_28, %c0_29] : memref<128x1xf32, #tpu.memory_space<vmem>>, vector<128x1xf32>
    %cst_30 = arith.constant dense<0.000000e+00> : vector<8x1xf32>
    %36 = tpu.matmul %34, %35, %cst_30 {dimension_numbers = #tpu.dot_dimension_numbers<[1], [0], [0], [1], [0, 0, 1, 1], [], []>} : vector<8x128xf32>, vector<128x1xf32>, vector<8x1xf32> -> vector<8x1xf32>
    %c0_31 = arith.constant 0 : index
    %c0_32 = arith.constant 0 : index
    %37 = vector.load %arg7[%c0_31, %c0_32] : memref<1x1xf32, #tpu.memory_space<vmem>>, vector<1x1xf32>
    %38 = vector.broadcast %37 : vector<1x1xf32> to vector<8x1xf32>
    %39 = arith.addf %36, %38 : vector<8x1xf32>
    %c0_33 = arith.constant 0 : index
    %c0_34 = arith.constant 0 : index
    %40 = vector.load %arg8[%c0_33, %c0_34] : memref<8x1xf32, #tpu.memory_space<vmem>>, vector<8x1xf32>
    tpu.vector_store %arg8[%c0_33, %c0_34], %39 {strides = array<i32>} : memref<8x1xf32, #tpu.memory_space<vmem>>, vector<8x1xf32>,
    return
  }
  func.func @transform_0(%arg0: i32) -> (i32, i32) {
    %c0_i32 = arith.constant 0 : i32
    %c0_i32_0 = arith.constant 0 : i32
    return %arg0, %c0_i32 : i32, i32
  }
  func.func @transform_1(%arg0: i32) -> (i32, i32) {
    %c0_i32 = arith.constant 0 : i32
    %c0_i32_0 = arith.constant 0 : i32
    %c0_i32_1 = arith.constant 0 : i32
    return %c0_i32, %c0_i32_0 : i32, i32
  }
  func.func @transform_2(%arg0: i32) -> (i32, i32) {
    %c0_i32 = arith.constant 0 : i32
    %c0_i32_0 = arith.constant 0 : i32
    %c0_i32_1 = arith.constant 0 : i32
    return %c0_i32, %c0_i32_0 : i32, i32
  }
  func.func @transform_3(%arg0: i32) -> (i32, i32, i32) {
    %c0_i32 = arith.constant 0 : i32
    %c0_i32_0 = arith.constant 0 : i32
    %c0_i32_1 = arith.constant 0 : i32
    %c0_i32_2 = arith.constant 0 : i32
    return %c0_i32, %c0_i32_0, %c0_i32_1 : i32, i32, i32
  }
  func.func @transform_4(%arg0: i32) -> (i32, i32, i32) {
    %c0_i32 = arith.constant 0 : i32
    %c0_i32_0 = arith.constant 0 : i32
    %c0_i32_1 = arith.constant 0 : i32
    %c0_i32_2 = arith.constant 0 : i32
    return %c0_i32, %c0_i32_0, %c0_i32_1 : i32, i32, i32
  }
  func.func @transform_5(%arg0: i32) -> (i32, i32) {
    %c0_i32 = arith.constant 0 : i32
    %c0_i32_0 = arith.constant 0 : i32
    %c0_i32_1 = arith.constant 0 : i32
    return %c0_i32, %c0_i32_0 : i32, i32
  }
  func.func @transform_6(%arg0: i32) -> (i32, i32) {
    %c0_i32 = arith.constant 0 : i32
    %c0_i32_0 = arith.constant 0 : i32
    %c0_i32_1 = arith.constant 0 : i32
    return %c0_i32, %c0_i32_0 : i32, i32
  }
  func.func @transform_7(%arg0: i32) -> (i32, i32) {
    %c0_i32 = arith.constant 0 : i32
    %c0_i32_0 = arith.constant 0 : i32
    return %arg0, %c0_i32 : i32, i32
  }
}

</mosaic_0001>

<llo_original>
// kernel: tpu_custom_call.1
$region0: #{tpu_custom_call.1}
  #allocation0 [shape = 'u32[]', space=smem, size = 0x4, offset = 0x4, fixed_abs, tag = 'smem constant byte address 0x4 - core index']
  #allocation1 [shape = 'u32[72,128]{1,0:T(1,128)}', space=vmem, size = 0x9000, scoped, tag = 'internal scratch']
  #allocation2 [shape = 'f32[1,1]{1,0:T(1,128)S(1)}', space=vmem, size = 0x200, scoped, tag = 'scoped memory for tpu_custom_call.1']
  %s0 = inlined_call_operand.vmem [shape: f32[8,8], index: 0, kind: input, shape index: {}]
  %s1 = inlined_call_operand.vmem [shape: f32[8,128], index: 1, kind: input, shape index: {}]
  %s2 = inlined_call_operand.vmem [shape: f32[1,128], index: 2, kind: input, shape index: {}]
  %s3 = inlined_call_operand.hbm [shape: f32[3,128,128], index: 3, kind: input, shape index: {}]
  %s4 = inlined_call_operand.vmem [shape: f32[3,1,128], index: 4, kind: input, shape index: {}]
  %s5 = inlined_call_operand.vmem [shape: f32[128,1], index: 5, kind: input, shape index: {}]
  %s6 = inlined_call_operand.<no memory space> [shape: f32[1,1], index: 6, kind: input, shape index: {}]
  %s7 = inlined_call_operand.vmem [shape: f32[8,1], index: 7, kind: output, shape index: {}]
  %s8 = sld [smem:[#allocation0]]
  $region42: #{tpu_custom_call.1} parent=0
    _
  %s10 = ssub.s32 1, %s8
  %s11 = scalar_select 0, %s10, %s8
  %v12 = vstv %s6
  %13 = vst [vmem:[#allocation2] sm:$0x1] %v12
  $region1: #{tpu_custom_call.1} parent=0
    #allocation3 [shape = 'u8[196608]{0}', space=vmem, size = 0x30000, scoped, tag = 'input window, operand 3, single buffered']
    #allocation4 [shape = 's32[1]{0}', space=sflag, size = 0x4, scoped, tag = 'scoped memory for tpu_custom_call.1']
    %14 = vsyncpa [#allocation4], 0
    // Predicated region
    $region2: #{tpu_custom_call.1} parent=1 // pred_check
      _
    $region3: #{tpu_custom_call.1} parent=1 // pred_check_branch
      %16 = sbr.rel (0) target = $region5
    $region4: #{tpu_custom_call.1} parent=1 // pred_region
      _
    $region5: #{tpu_custom_call.1} parent=1 // pred_fallthru
      _
    // Predicated region
    $region6: #{tpu_custom_call.1} parent=1 // pred_check
      _
    $region7: #{tpu_custom_call.1} parent=1 // pred_check_branch
      %18 = sbr.rel (0) target = $region9
    $region8: #{tpu_custom_call.1} parent=1 // pred_region
      _
    $region9: #{tpu_custom_call.1} parent=1 // pred_fallthru
      _
    // Predicated region
    $region10: #{tpu_custom_call.1} parent=1 // pred_check
      _
    $region11: #{tpu_custom_call.1} parent=1 // pred_check_branch
      %20 = sbr.rel (0) target = $region13
    $region12: #{tpu_custom_call.1} parent=1 // pred_region
      _
    $region13: #{tpu_custom_call.1} parent=1 // pred_fallthru
      _
    // Predicated region
    $region14: #{tpu_custom_call.1} parent=1 // pred_check
      _
    $region15: #{tpu_custom_call.1} parent=1 // pred_check_branch
      %22 = sbr.rel (0) target = $region17
    $region16: #{tpu_custom_call.1} parent=1 // pred_region
      %24 = vsyncadd [#allocation4], 0
      %s25 = sshll.u32 %s3, 4
      %s26 = int_to_ptr.hbm [resolvable:$true] %s25
      %s27 = sshll.u32 [#allocation3], 4
      %s28 = int_to_ptr.vmem [resolvable:$true] %s27
      %33 = dma.hbm_to_vmem [thread:$0]  %s26, 6144, %s28, [#allocation4], 128, 128, 8
    $region17: #{tpu_custom_call.1} parent=1 // pred_fallthru
      _
    // Predicated region
    $region18: #{tpu_custom_call.1} parent=1 // pred_check
      _
    $region19: #{tpu_custom_call.1} parent=1 // pred_check_branch
      %35 = sbr.rel (0) target = $region21
    $region20: #{tpu_custom_call.1} parent=1 // pred_region
      _
    $region21: #{tpu_custom_call.1} parent=1 // pred_fallthru
      _
    // Predicated region
    $region22: #{tpu_custom_call.1} parent=1 // pred_check
      _
    $region23: #{tpu_custom_call.1} parent=1 // pred_check_branch
      %37 = sbr.rel (0) target = $region25
    $region24: #{tpu_custom_call.1} parent=1 // pred_region
      _
    $region25: #{tpu_custom_call.1} parent=1 // pred_fallthru
      _
    // Predicated region
    $region26: #{tpu_custom_call.1} parent=1 // pred_check
      _
    $region27: #{tpu_custom_call.1} parent=1 // pred_check_branch
      %39 = sbr.rel (0) target = $region29
    $region28: #{tpu_custom_call.1} parent=1 // pred_region
      _
    $region29: #{tpu_custom_call.1} parent=1 // pred_fallthru
      _
    // Predicated region
    $region30: #{tpu_custom_call.1} parent=1 // pred_check
      _
    $region31: #{tpu_custom_call.1} parent=1 // pred_check_branch
      %41 = sbr.rel (0) target = $region33
    $region32: #{tpu_custom_call.1} parent=1 // pred_region
      %43 = dma.done [#allocation4], 6144
    $region33: #{tpu_custom_call.1} parent=1 // pred_fallthru
      _
    %v44 = vld [vmem:[%s0] sm:$0xff]
    %v45 = vld [vmem:[%s1] sm:$0xff]
    %v46 = vld [vmem:[%s2] sm:$0x1]
    %v48 = vperm.slane %v46, 0
    %vm50 = vcmask 64512
    %v52 = vsel %vm50, %v44, 0
    %54 = vmatpush.msra.mxu0 0.0
    %55 = vmatpush.msra.mxu0 0.0
    %56 = vmatpush.msra.mxu0 0.0
    %57 = vmatpush.msra.mxu0 0.0
    %58 = vmatpush.msra.mxu0 0.0
    %59 = vmatpush.msra.mxu0 0.0
    %60 = vmatpush.msra.mxu0 0.0
    %61 = vmatpush.msra.mxu0 0.0
    %62 = vmatpush.msra.mxu0 0.0
    %63 = vmatpush.msra.mxu0 0.0
    %64 = vmatpush.msra.mxu0 0.0
    %65 = vmatpush.msra.mxu0 0.0
    %66 = vmatpush.msra.mxu0 0.0
    %67 = vmatpush.msra.mxu0 0.0
    %68 = vmatpush.msra.mxu0 0.0
    %69 = vmatpush.msra.mxu0 %v45
    %70 = vmatmul.f32.gmra.mxu0 %v52
    %v71 = vpop.f32.mrf.mxu0
    %v72 = vadd.f32 %v48, %v71
    %73 = vdwg.mxu0
    %v74 = vmax.f32 %v72, 0.0
    %v75 = vld [vmem:[#allocation3] sm:$0xff]
    %v76 = vld [vmem:[#allocation3 + $0x8] sm:$0xff]
    %v77 = vld [vmem:[#allocation3 + $0x10] sm:$0xff]
    %v78 = vld [vmem:[#allocation3 + $0x18] sm:$0xff]
    %v79 = vld [vmem:[#allocation3 + $0x20] sm:$0xff]
    %v80 = vld [vmem:[#allocation3 + $0x28] sm:$0xff]
    %v81 = vld [vmem:[#allocation3 + $0x30] sm:$0xff]
    %v82 = vld [vmem:[#allocation3 + $0x38] sm:$0xff]
    %v83 = vld [vmem:[#allocation3 + $0x40] sm:$0xff]
    %v84 = vld [vmem:[#allocation3 + $0x48] sm:$0xff]
    %v85 = vld [vmem:[#allocation3 + $0x50] sm:$0xff]
    %v86 = vld [vmem:[#allocation3 + $0x58] sm:$0xff]
    %v87 = vld [vmem:[#allocation3 + $0x60] sm:$0xff]
    %v88 = vld [vmem:[#allocation3 + $0x68] sm:$0xff]
    %v89 = vld [vmem:[#allocation3 + $0x70] sm:$0xff]
    %v90 = vld [vmem:[#allocation3 + $0x78] sm:$0xff]
    %v91 = vld [vmem:[%s4] sm:$0x1]
    %v93 = vperm.slane %v91, 0
    %95 = vmatpush.msra.mxu0 %v90
    %96 = vmatpush.msra.mxu0 %v89
    %97 = vmatpush.msra.mxu0 %v88
    %98 = vmatpush.msra.mxu0 %v87
    %99 = vmatpush.msra.mxu0 %v86
    %100 = vmatpush.msra.mxu0 %v85
    %101 = vmatpush.msra.mxu0 %v84
    %102 = vmatpush.msra.mxu0 %v83
    %103 = vmatpush.msra.mxu0 %v82
    %104 = vmatpush.msra.mxu0 %v81
    %105 = vmatpush.msra.mxu0 %v80
    %106 = vmatpush.msra.mxu0 %v79
    %107 = vmatpush.msra.mxu0 %v78
    %108 = vmatpush.msra.mxu0 %v77
    %109 = vmatpush.msra.mxu0 %v76
    %110 = vmatpush.msra.mxu0 %v75
    %111 = vmatmul.f32.gmra.mxu0 %v74
    %v112 = vpop.f32.mrf.mxu0
    %v113 = vadd.f32 %v93, %v112
    %114 = vdwg.mxu0
    %v115 = vmax.f32 %v113, 0.0
    %s116 = scalar_lea.vmem [#allocation3], 128
    %v117 = vld [vmem:[%s116] sm:$0xff]
    %v118 = vld [vmem:[%s116 + $0x8] sm:$0xff]
    %v119 = vld [vmem:[%s116 + $0x10] sm:$0xff]
    %v120 = vld [vmem:[%s116 + $0x18] sm:$0xff]
    %v121 = vld [vmem:[%s116 + $0x20] sm:$0xff]
    %v122 = vld [vmem:[%s116 + $0x28] sm:$0xff]
    %v123 = vld [vmem:[%s116 + $0x30] sm:$0xff]
    %v124 = vld [vmem:[%s116 + $0x38] sm:$0xff]
    %v125 = vld [vmem:[%s116 + $0x40] sm:$0xff]
    %v126 = vld [vmem:[%s116 + $0x48] sm:$0xff]
    %v127 = vld [vmem:[%s116 + $0x50] sm:$0xff]
    %v128 = vld [vmem:[%s116 + $0x58] sm:$0xff]
    %v129 = vld [vmem:[%s116 + $0x60] sm:$0xff]
    %v130 = vld [vmem:[%s116 + $0x68] sm:$0xff]
    %v131 = vld [vmem:[%s116 + $0x70] sm:$0xff]
    %v132 = vld [vmem:[%s116 + $0x78] sm:$0xff]
    %s133 = scalar_lea.vmem %s4, 1
    %v134 = vld [vmem:[%s133] sm:$0x1]
    %v136 = vperm.slane %v134, 0
    %138 = vmatpush.msra.mxu0 %v132
    %139 = vmatpush.msra.mxu0 %v131
    %140 = vmatpush.msra.mxu0 %v130
    %141 = vmatpush.msra.mxu0 %v129
    %142 = vmatpush.msra.mxu0 %v128
    %143 = vmatpush.msra.mxu0 %v127
    %144 = vmatpush.msra.mxu0 %v126
    %145 = vmatpush.msra.mxu0 %v125
    %146 = vmatpush.msra.mxu0 %v124
    %147 = vmatpush.msra.mxu0 %v123
    %148 = vmatpush.msra.mxu0 %v122
    %149 = vmatpush.msra.mxu0 %v121
    %150 = vmatpush.msra.mxu0 %v120
    %151 = vmatpush.msra.mxu0 %v119
    %152 = vmatpush.msra.mxu0 %v118
    %153 = vmatpush.msra.mxu0 %v117
    %154 = vmatmul.f32.gmra.mxu0 %v115
    %v155 = vpop.f32.mrf.mxu0
    %v156 = vadd.f32 %v136, %v155
    %157 = vdwg.mxu0
    %v158 = vmax.f32 %v156, 0.0
    %s159 = scalar_lea.vmem [#allocation3], 256
    %v160 = vld [vmem:[%s159] sm:$0xff]
    %v161 = vld [vmem:[%s159 + $0x8] sm:$0xff]
    %v162 = vld [vmem:[%s159 + $0x10] sm:$0xff]
    %v163 = vld [vmem:[%s159 + $0x18] sm:$0xff]
    %v164 = vld [vmem:[%s159 + $0x20] sm:$0xff]
    %v165 = vld [vmem:[%s159 + $0x28] sm:$0xff]
    %v166 = vld [vmem:[%s159 + $0x30] sm:$0xff]
    %v167 = vld [vmem:[%s159 + $0x38] sm:$0xff]
    %v168 = vld [vmem:[%s159 + $0x40] sm:$0xff]
    %v169 = vld [vmem:[%s159 + $0x48] sm:$0xff]
    %v170 = vld [vmem:[%s159 + $0x50] sm:$0xff]
    %v171 = vld [vmem:[%s159 + $0x58] sm:$0xff]
    %v172 = vld [vmem:[%s159 + $0x60] sm:$0xff]
    %v173 = vld [vmem:[%s159 + $0x68] sm:$0xff]
    %v174 = vld [vmem:[%s159 + $0x70] sm:$0xff]
    %v175 = vld [vmem:[%s159 + $0x78] sm:$0xff]
    %s176 = scalar_lea.vmem %s4, 2
    %v177 = vld [vmem:[%s176] sm:$0x1]
    %v179 = vperm.slane %v177, 0
    %181 = vmatpush.msra.mxu0 %v175
    %182 = vmatpush.msra.mxu0 %v174
    %183 = vmatpush.msra.mxu0 %v173
    %184 = vmatpush.msra.mxu0 %v172
    %185 = vmatpush.msra.mxu0 %v171
    %186 = vmatpush.msra.mxu0 %v170
    %187 = vmatpush.msra.mxu0 %v169
    %188 = vmatpush.msra.mxu0 %v168
    %189 = vmatpush.msra.mxu0 %v167
    %190 = vmatpush.msra.mxu0 %v166
    %191 = vmatpush.msra.mxu0 %v165
    %192 = vmatpush.msra.mxu0 %v164
    %193 = vmatpush.msra.mxu0 %v163
    %194 = vmatpush.msra.mxu0 %v162
    %195 = vmatpush.msra.mxu0 %v161
    %196 = vmatpush.msra.mxu0 %v160
    %197 = vmatmul.f32.gmra.mxu0 %v158
    %v198 = vpop.f32.mrf.mxu0
    %v199 = vadd.f32 %v179, %v198
    %200 = vdwg.mxu0
    %v201 = vmax.f32 %v199, 0.0
    %v202 = vld [vmem:[%s5] sm:$0xff]
    %v203 = vld [vmem:[%s5 + $0x8] sm:$0xff]
    %v204 = vld [vmem:[%s5 + $0x10] sm:$0xff]
    %v205 = vld [vmem:[%s5 + $0x18] sm:$0xff]
    %v206 = vld [vmem:[%s5 + $0x20] sm:$0xff]
    %v207 = vld [vmem:[%s5 + $0x28] sm:$0xff]
    %v208 = vld [vmem:[%s5 + $0x30] sm:$0xff]
    %v209 = vld [vmem:[%s5 + $0x38] sm:$0xff]
    %v210 = vld [vmem:[%s5 + $0x40] sm:$0xff]
    %v211 = vld [vmem:[%s5 + $0x48] sm:$0xff]
    %v212 = vld [vmem:[%s5 + $0x50] sm:$0xff]
    %v213 = vld [vmem:[%s5 + $0x58] sm:$0xff]
    %v214 = vld [vmem:[%s5 + $0x60] sm:$0xff]
    %v215 = vld [vmem:[%s5 + $0x68] sm:$0xff]
    %v216 = vld [vmem:[%s5 + $0x70] sm:$0xff]
    %v217 = vld [vmem:[%s5 + $0x78] sm:$0xff]
    %v218 = vld [vmem:[#allocation2] sm:$0x1]
    %v220 = vperm.slane %v218, 0
    %222 = vmatpush.msra.mxu0 %v217
    %223 = vmatpush.msra.mxu0 %v216
    %224 = vmatpush.msra.mxu0 %v215
    %225 = vmatpush.msra.mxu0 %v214
    %226 = vmatpush.msra.mxu0 %v213
    %227 = vmatpush.msra.mxu0 %v212
    %228 = vmatpush.msra.mxu0 %v211
    %229 = vmatpush.msra.mxu0 %v210
    %230 = vmatpush.msra.mxu0 %v209
    %231 = vmatpush.msra.mxu0 %v208
    %232 = vmatpush.msra.mxu0 %v207
    %233 = vmatpush.msra.mxu0 %v206
    %234 = vmatpush.msra.mxu0 %v205
    %235 = vmatpush.msra.mxu0 %v204
    %236 = vmatpush.msra.mxu0 %v203
    %237 = vmatpush.msra.mxu0 %v202
    %238 = vmatmul.f32.gmra.mxu0 %v201
    %v239 = vpop.f32.mrf.mxu0
    %v240 = vadd.f32 %v220, %v239
    %241 = vdwg.mxu0
    %vm242 = vcmask 7168
    %243 = vst.msk [vmem:[%s7] sm:$0xff] %vm242, %v240
    // Predicated region
    $region34: #{tpu_custom_call.1} parent=1 // pred_check
      _
    $region35: #{tpu_custom_call.1} parent=1 // pred_check_branch
      %245 = sbr.rel (0) target = $region37
    $region36: #{tpu_custom_call.1} parent=1 // pred_region
      _
    $region37: #{tpu_custom_call.1} parent=1 // pred_fallthru
      _
    // Predicated region
    $region38: #{tpu_custom_call.1} parent=1 // pred_check
      _
    $region39: #{tpu_custom_call.1} parent=1 // pred_check_branch
      %247 = sbr.rel (0) target = $region41
    $region40: #{tpu_custom_call.1} parent=1 // pred_region
      _
    $region41: #{tpu_custom_call.1} parent=1 // pred_fallthru
      _
    %248 = vsyncpa [#allocation4], 1

</llo_original>
